<compile_context>
chip_gen: v7x
topology: tpu7x:2x2x1
jax: 0.10.0
libtpu: 0.0.40
codegen_flags: <defaults>
</compile_context>

<pallas_src>
import functools

import jax
import jax.numpy as jnp
from jax.experimental import pallas as pl
from jax.experimental.pallas import tpu as pltpu

EPS = 1e-4            # BatchNorm eps from _bn()
TILE_M = 256          # row tile for the conv/linear matmuls
LANE = 128
_VMEM_LIMIT = 48 * 1024 * 1024


def _round_up(v, m):
    return (v + m - 1) // m * m


# ----------------------------------------------------------------------------
# Pallas kernels
# ----------------------------------------------------------------------------
def _matmul_affine_kernel(x_ref, w_ref, scale_ref, shift_ref, out_ref, *, apply_relu):
    # y = (x @ w) * scale + shift ; optional ReLU.  bf16 operands, f32 accumulate.
    y = jnp.dot(x_ref[...], w_ref[...], preferred_element_type=jnp.float32)
    y = y * scale_ref[...] + shift_ref[...]
    if apply_relu:
        y = jnp.maximum(y, 0.0)
    out_ref[...] = y.astype(out_ref.dtype)


def _fma_affine_kernel(x_ref, w_ref, scale_ref, shift_ref, out_ref, *, apply_relu, k):
    # Tiny-K conv (Cin=3): K broadcast FMAs on the VPU, no MXU pass. f32 math.
    x = x_ref[...].astype(jnp.float32)
    w = w_ref[...].astype(jnp.float32)
    y = x[:, 0:1] * w[0:1, :]
    for c in range(1, k):
        y = y + x[:, c:c + 1] * w[c:c + 1, :]
    y = y * scale_ref[...] + shift_ref[...]
    if apply_relu:
        y = jnp.maximum(y, 0.0)
    out_ref[...] = y.astype(out_ref.dtype)


def _double_matmul_kernel(x_ref, w1_ref, s1_ref, b1_ref, w2_ref, s2_ref, b2_ref,
                          out_ref):
    # Two chained 1x1 conv + BN + ReLU in VMEM (no HBM round trip in between).
    y1 = jnp.dot(x_ref[...], w1_ref[...], preferred_element_type=jnp.float32)
    y1 = jnp.maximum(y1 * s1_ref[...] + b1_ref[...], 0.0)
    y2 = jnp.dot(y1.astype(jnp.bfloat16), w2_ref[...],
                 preferred_element_type=jnp.float32)
    y2 = jnp.maximum(y2 * s2_ref[...] + b2_ref[...], 0.0)
    out_ref[...] = y2.astype(out_ref.dtype)


def _bilstm_kernel(gx_ref, whh_ref, outf_ref, outr_ref, h_scr, c_scr, *, hidden):
    # Fused forward+reverse LSTM recurrence; the input projections (x @ W_ih +
    # biases) were precomputed and arrive per time step in gx_ref.
    # Lane layout of the 8H gates: [i_f, i_r, f_f, f_r, g_f, g_r, o_f, o_r].
    # State layout: h_scr/c_scr = [h_f | h_r], [c_f | c_r]  (b, 2H) in f32.
    H = hidden

    @pl.when(pl.program_id(0) == 0)
    def _():
        h_scr[...] = jnp.zeros_like(h_scr)      # h0 = c0 = 0 (BidirectionalLSTM)
        c_scr[...] = jnp.zeros_like(c_scr)

    h = h_scr[...]                               # (b, 2H)
    c = c_scr[...]                               # (b, 2H)
    # Block-diagonal recurrent matmul: one MXU op computes both directions.
    gates = (jnp.dot(h.astype(jnp.bfloat16), whh_ref[...],
                     preferred_element_type=jnp.float32)
             + gx_ref[0])                        # (b, 8H) f32
    # Whole-vreg nonlinearities + lane-mask select (g lanes get tanh).
    lane = jax.lax.broadcasted_iota(jnp.int32, gates.shape, 1)
    is_g = jnp.logical_and(lane >= 4 * H, lane < 6 * H)
    act = jnp.where(is_g, jnp.tanh(gates), jax.nn.sigmoid(gates))
    i_g = act[:, 0 * 2 * H:1 * 2 * H]            # (b, 2H): [i_f | i_r]
    f_g = act[:, 1 * 2 * H:2 * 2 * H]
    g_g = act[:, 2 * 2 * H:3 * 2 * H]
    o_g = act[:, 3 * 2 * H:4 * 2 * H]
    c_new = f_g * c + i_g * g_g                  # both directions at once
    h_new = o_g * jnp.tanh(c_new)
    c_scr[...] = c_new
    h_scr[...] = h_new
    outf_ref[0] = h_new[:, 0:H]                  # forward output at position t
    outr_ref[0] = h_new[:, H:2 * H]              # reverse output at position T-1-t


# ----------------------------------------------------------------------------
# Pallas wrappers (tiling / padding)
# ----------------------------------------------------------------------------
def affine_proj(x, w, scale, shift, *, relu, out_dtype=jnp.float32):
    """y = relu?((x @ w) * scale + shift), tiled over rows.

    x: (M, K); w: (K, N); scale/shift: (N,).  Rows are padded to the tile size
    and N is padded to a multiple of 128 (lane-dense stores); both sliced back.
    """
    M, K = x.shape
    N = w.shape[1]
    n_pad = _round_up(N, LANE)
    if M > TILE_M:
        tm = TILE_M
        m_pad = _round_up(M, TILE_M)
    else:
        tm = _round_up(max(M, 8), 8)
        m_pad = tm
    if m_pad != M:
        x = jnp.pad(x, ((0, m_pad - M), (0, 0)))
    if n_pad != N:
        w = jnp.pad(w, ((0, 0), (0, n_pad - N)))
        scale = jnp.pad(scale, (0, n_pad - N))
        shift = jnp.pad(shift, (0, n_pad - N))
    if K < 8:
        # VPU FMA path for the lane-sparse Cin=3 conv; stays f32 (no bf16 VPU on v5e).
        x = x.astype(jnp.float32)
        w = w.astype(jnp.float32)
        kernel = functools.partial(_fma_affine_kernel, apply_relu=relu, k=K)
    else:
        x = x.astype(jnp.bfloat16)
        w = w.astype(jnp.bfloat16)
        kernel = functools.partial(_matmul_affine_kernel, apply_relu=relu)
    scale = scale.astype(jnp.float32).reshape(1, n_pad)
    shift = shift.astype(jnp.float32).reshape(1, n_pad)
    out = pl.pallas_call(
        kernel,
        out_shape=jax.ShapeDtypeStruct((m_pad, n_pad), out_dtype),
        grid=(m_pad // tm,),
        in_specs=[
            pl.BlockSpec((tm, K), lambda i: (i, 0)),
            pl.BlockSpec((K, n_pad), lambda i: (0, 0)),      # weight stays resident
            pl.BlockSpec((1, n_pad), lambda i: (0, 0)),
            pl.BlockSpec((1, n_pad), lambda i: (0, 0)),
        ],
        out_specs=pl.BlockSpec((tm, n_pad), lambda i: (i, 0)),
        compiler_params=pltpu.CompilerParams(
            dimension_semantics=("parallel",),
            vmem_limit_bytes=_VMEM_LIMIT),
    )(x, w, scale, shift)
    return out[:M, :N]


def fold_bn(p):
    # eval-mode BN folded into per-channel scale/shift; conv bias folded too.
    inv_std = 1.0 / jnp.sqrt(p["bn_var"] + EPS)
    scale = p["bn_gamma"] * inv_std
    shift = p["bn_beta"] - p["bn_mean"] * scale + p["b"] * scale
    return scale, shift


def conv1x1_bn_relu(x_nhwc, p):
    Nb, Hh, Wd, Cin = x_nhwc.shape
    w2d = p["w"][:, :, 0, 0].T                  # (Cin, Cout)
    Cout = w2d.shape[1]
    scale, shift = fold_bn(p)
    y = affine_proj(x_nhwc.reshape(Nb * Hh * Wd, Cin), w2d, scale, shift,
                    relu=True, out_dtype=jnp.bfloat16)
    return y.reshape(Nb, Hh, Wd, Cout)


def double_conv1x1(x_nhwc, p1, p2):
    # Fused conv(+BN+ReLU) -> conv(+BN+ReLU) with no pool in between.
    Nb, Hh, Wd, Cin = x_nhwc.shape
    w1 = p1["w"][:, :, 0, 0].T.astype(jnp.bfloat16)       # (Cin, Cmid)
    w2 = p2["w"][:, :, 0, 0].T.astype(jnp.bfloat16)       # (Cmid, Cout)
    Cmid, Cout = w1.shape[1], w2.shape[1]
    s1, b1 = fold_bn(p1)
    s2, b2 = fold_bn(p2)
    M = Nb * Hh * Wd
    x = x_nhwc.reshape(M, Cin).astype(jnp.bfloat16)
    if M > TILE_M:
        tm = TILE_M
        m_pad = _round_up(M, TILE_M)
    else:
        tm = _round_up(max(M, 8), 8)
        m_pad = tm
    if m_pad != M:
        x = jnp.pad(x, ((0, m_pad - M), (0, 0)))
    out = pl.pallas_call(
        _double_matmul_kernel,
        out_shape=jax.ShapeDtypeStruct((m_pad, Cout), jnp.bfloat16),
        grid=(m_pad // tm,),
        in_specs=[
            pl.BlockSpec((tm, Cin), lambda i: (i, 0)),
            pl.BlockSpec((Cin, Cmid), lambda i: (0, 0)),
            pl.BlockSpec((1, Cmid), lambda i: (0, 0)),
            pl.BlockSpec((1, Cmid), lambda i: (0, 0)),
            pl.BlockSpec((Cmid, Cout), lambda i: (0, 0)),
            pl.BlockSpec((1, Cout), lambda i: (0, 0)),
            pl.BlockSpec((1, Cout), lambda i: (0, 0)),
        ],
        out_specs=pl.BlockSpec((tm, Cout), lambda i: (i, 0)),
        compiler_params=pltpu.CompilerParams(
            dimension_semantics=("parallel",),
            vmem_limit_bytes=_VMEM_LIMIT),
    )(x, w1, s1.reshape(1, Cmid).astype(jnp.float32),
      b1.reshape(1, Cmid).astype(jnp.float32),
      w2, s2.reshape(1, Cout).astype(jnp.float32),
      b2.reshape(1, Cout).astype(jnp.float32))
    return out[:M].reshape(Nb, Hh, Wd, Cout)


def conv2x2_bn_relu(x_nhwc, p):
    # 'valid' 2x2 conv via im2col (glue) + tiled Pallas matmul.
    Nb, Hh, Wd, Cin = x_nhwc.shape
    assert Hh == 2
    Cout = p["w"].shape[0]
    Wo = Wd - 1
    patches = jnp.stack(
        [x_nhwc[:, kh, kw:kw + Wo, :] for kh in (0, 1) for kw in (0, 1)],
        axis=-1)                                # (Nb, Wo, Cin, 4) ; 4 = kh*2+kw
    patches = patches.reshape(Nb * Wo, Cin * 4)
    w_flat = p["w"].reshape(Cout, Cin * 4).T    # (Cin*4, Cout)
    scale, shift = fold_bn(p)
    y = affine_proj(patches, w_flat, scale, shift, relu=True,
                    out_dtype=jnp.bfloat16)
    return y.reshape(Nb, 1, Wo, Cout)


def maxpool_2x2(x):  # kernel 2x2, stride 2 (cheap glue reduction)
    Nb, Hh, Wd, C = x.shape
    return x.reshape(Nb, Hh // 2, 2, Wd // 2, 2, C).max(axis=(2, 4))


def maxpool_2x1(x):  # kernel (2,1), stride (2,1)
    Nb, Hh, Wd, C = x.shape
    return x.reshape(Nb, Hh // 2, 2, Wd, C).max(axis=2)


def bidirectional_lstm_block(x, p):
    # x: (T, b, nIn) -> (T, b, nOut); matches BidirectionalLSTM.forward.
    T, b, nIn = x.shape
    H = p["w_hh_f"].shape[1]
    H4 = 4 * H

    # Hoist the time-independent input projection out of the recurrence: one big
    # MXU matmul over all T*b rows (biases folded in here).
    x_flat = x.reshape(T * b, nIn)
    ones4 = jnp.ones((H4,), jnp.float32)
    gxf = affine_proj(x_flat, p["w_ih_f"].T, ones4, p["b_ih_f"] + p["b_hh_f"],
                      relu=False, out_dtype=jnp.float32).reshape(T, b, H4)
    gxr = affine_proj(x_flat, p["w_ih_r"].T, ones4, p["b_ih_r"] + p["b_hh_r"],
                      relu=False, out_dtype=jnp.float32).reshape(T, b, H4)
    gxr = gxr[::-1]          # reverse direction consumes x[T-1-t] at grid step t

    # Interleave per-gate blocks of both directions (PyTorch gate order i,f,g,o):
    # lanes = [i_f, i_r, f_f, f_r, g_f, g_r, o_f, o_r], each H wide.
    gx = jnp.concatenate(
        [gxf[..., k * H:(k + 1) * H] if d == 0 else gxr[..., k * H:(k + 1) * H]
         for k in range(4) for d in (0, 1)], axis=-1)       # (T, b, 8H)

    # Block-diagonal recurrent weight (2H, 8H) matching that lane layout.
    whf = p["w_hh_f"].T                                     # (H, 4H)
    whr = p["w_hh_r"].T
    z = jnp.zeros((H, H), jnp.float32)
    top = jnp.concatenate(
        [whf[:, k * H:(k + 1) * H] if d == 0 else z
         for k in range(4) for d in (0, 1)], axis=1)
    bot = jnp.concatenate(
        [z if d == 0 else whr[:, k * H:(k + 1) * H]
         for k in range(4) for d in (0, 1)], axis=1)
    whh = jnp.concatenate([top, bot], axis=0).astype(jnp.bfloat16)   # (2H, 8H)

    kernel = functools.partial(_bilstm_kernel, hidden=H)
    out_f, out_r = pl.pallas_call(
        kernel,
        out_shape=(jax.ShapeDtypeStruct((T, b, H), jnp.float32),
                   jax.ShapeDtypeStruct((T, b, H), jnp.float32)),
        grid=(T,),
        in_specs=[
            pl.BlockSpec((1, b, 8 * H), lambda t: (t, 0, 0)),
            pl.BlockSpec((2 * H, 8 * H), lambda t: (0, 0)),   # resident weight
        ],
        out_specs=(pl.BlockSpec((1, b, H), lambda t: (t, 0, 0)),
                   pl.BlockSpec((1, b, H), lambda t: (T - 1 - t, 0, 0))),
        scratch_shapes=[pltpu.VMEM((b, 2 * H), jnp.float32),   # h = [h_f | h_r]
                        pltpu.VMEM((b, 2 * H), jnp.float32)],  # c = [c_f | c_r]
        compiler_params=pltpu.CompilerParams(
            dimension_semantics=("arbitrary",),
            vmem_limit_bytes=_VMEM_LIMIT),
    )(gx, whh)

    rec = jnp.concatenate([out_f, out_r], axis=-1)            # (T, b, 2H)
    # Linear embedding (nOut padded to 128 lanes inside affine_proj, sliced back).
    w_emb = p["emb_w"].T                                      # (2H, nOut)
    nOut = w_emb.shape[1]
    out = affine_proj(rec.reshape(T * b, 2 * H), w_emb,
                      jnp.ones((nOut,), jnp.float32), p["emb_b"],
                      relu=False, out_dtype=jnp.float32)
    return out.reshape(T, b, nOut)


# ----------------------------------------------------------------------------
# Forward pass
# ----------------------------------------------------------------------------
def crnn_forward(x_nchw, params, cfg):
    # NCHW input -> NHWC internally (channels on the lane dim).
    x = jnp.transpose(x_nchw, (0, 2, 3, 1)).astype(jnp.float32)
    x = conv1x1_bn_relu(x, params["conv1"])                   # Cin=3 -> VPU FMA path
    x = maxpool_2x2(x)
    x = conv1x1_bn_relu(x, params["conv2"])
    x = maxpool_2x2(x)
    x = double_conv1x1(x, params["conv3"], params["conv4"])   # fused pair
    x = maxpool_2x1(x)
    x = double_conv1x1(x, params["conv5"], params["conv6"])   # fused pair
    x = maxpool_2x1(x)
    x = conv2x2_bn_relu(x, params["conv7"])
    # PyTorch: reshape(NCHW, (batch, input_size, -1)).permute(2, 0, 1)
    Nb, Ho, Wo, C = x.shape
    assert Ho == 1 and C == cfg["input_size"]
    seq = jnp.transpose(x[:, 0], (1, 0, 2)).astype(jnp.float32)   # (T, batch, C)
    seq = bidirectional_lstm_block(seq, params["rnn0"])
    seq = bidirectional_lstm_block(seq, params["rnn1"])
    return seq                                                # (T, batch, class_num)


# ----------------------------------------------------------------------------
# Deterministic synthetic parameter init
# ----------------------------------------------------------------------------
def init_params(key, cfg):
    H = cfg["hidden_size"]
    ncls = cfg["class_num"]
    nin = cfg["input_size"]
    conv_defs = [("conv1", 3, 64, 1), ("conv2", 64, 128, 1), ("conv3", 128, 256, 1),
                 ("conv4", 256, 256, 1), ("conv5", 256, 512, 1), ("conv6", 512, 512, 1),
                 ("conv7", 512, 512, 2)]
    params = {}
    for name, cin, cout, k in conv_defs:
        key, k1, k2, k3, k4, k5, k6 = jax.random.split(key, 7)
        params[name] = dict(
            w=jax.random.normal(k1, (cout, cin, k, k), jnp.float32) / jnp.sqrt(cin * k * k),
            b=0.1 * jax.random.normal(k2, (cout,), jnp.float32),
            bn_gamma=1.0 + 0.1 * jax.random.normal(k3, (cout,), jnp.float32),
            bn_beta=0.1 * jax.random.normal(k4, (cout,), jnp.float32),
            bn_mean=0.1 * jax.random.normal(k5, (cout,), jnp.float32),
            bn_var=jax.random.uniform(k6, (cout,), jnp.float32, 0.5, 1.5),
        )

    def lstm_block(key, n_in, n_hid, n_out):
        ks = jax.random.split(key, 10)
        s = 1.0 / jnp.sqrt(n_hid)
        return dict(
            w_ih_f=s * jax.random.normal(ks[0], (4 * n_hid, n_in), jnp.float32),
            w_hh_f=s * jax.random.normal(ks[1], (4 * n_hid, n_hid), jnp.float32),
            b_ih_f=s * jax.random.normal(ks[2], (4 * n_hid,), jnp.float32),
            b_hh_f=s * jax.random.normal(ks[3], (4 * n_hid,), jnp.float32),
            w_ih_r=s * jax.random.normal(ks[4], (4 * n_hid, n_in), jnp.float32),
            w_hh_r=s * jax.random.normal(ks[5], (4 * n_hid, n_hid), jnp.float32),
            b_ih_r=s * jax.random.normal(ks[6], (4 * n_hid,), jnp.float32),
            b_hh_r=s * jax.random.normal(ks[7], (4 * n_hid,), jnp.float32),
            emb_w=jax.random.normal(ks[8], (n_out, 2 * n_hid), jnp.float32) / jnp.sqrt(2 * n_hid),
            emb_b=0.1 * jax.random.normal(ks[9], (n_out,), jnp.float32),
        )

    key, ka, kb = jax.random.split(key, 3)
    params["rnn0"] = lstm_block(ka, nin, H, H)     # BidirectionalLSTM(input_size, hidden, hidden)
    params["rnn1"] = lstm_block(kb, H, H, ncls)    # BidirectionalLSTM(hidden, hidden, class_num)
    return params


if __name__ == "__main__":
    # Small config: batch=2, image 3x32x20 (height 32 so VGG output H==1),
    # input_size=512 (VGG output channels), hidden=32, 37 classes. T = 20/4 - 1 = 4.
    cfg = dict(batch_size=2, input_size=512, hidden_size=32, class_num=37)
    key = jax.random.PRNGKey(0)
    kp, kx = jax.random.split(key)
    params = init_params(kp, cfg)
    x = jax.random.normal(kx, (cfg["batch_size"], 3, 32, 20), jnp.float32)  # NCHW

    out = crnn_forward(x, params, cfg)
    out = jax.block_until_ready(out)
    assert out.shape == (4, cfg["batch_size"], cfg["class_num"]), out.shape
    assert bool(jnp.all(jnp.isfinite(out)))
    print("KERNEL_OK")
</pallas_src>

<mosaic_0001>
module attributes {stable_mosaic.version = 11 : i64} {
  func.func @_fma_affine_kernel(%arg0: i32, %arg1: memref<256x3xf32, #tpu.memory_space<vmem>>, %arg2: memref<3x128xf32, #tpu.memory_space<vmem>>, %arg3: memref<1x128xf32, #tpu.memory_space<vmem>>, %arg4: memref<1x128xf32, #tpu.memory_space<vmem>>, %arg5: memref<256x128xbf16, #tpu.memory_space<vmem>>) attributes {dimension_semantics = [#tpu.dimension_semantics<parallel>], iteration_bounds = array<i64: 5>, scalar_prefetch = 0 : i64, scratch_operands = 0 : i64, tpu.core_type = #tpu.core_type<tc>, window_params = [{transform_indices = @transform_0, window_bounds = array<i64: 256, 3>}, {pipeline_mode = #tpu.pipeline_mode<synchronous>, transform_indices = @transform_1, window_bounds = array<i64: 3, 128>}, {pipeline_mode = #tpu.pipeline_mode<synchronous>, transform_indices = @transform_2, window_bounds = array<i64: 1, 128>}, {pipeline_mode = #tpu.pipeline_mode<synchronous>, transform_indices = @transform_3, window_bounds = array<i64: 1, 128>}, {transform_indices = @transform_4, window_bounds = array<i64: 256, 128>}]} {
    %c0 = arith.constant 0 : index
    %c0_0 = arith.constant 0 : index
    %0 = vector.load %arg1[%c0, %c0_0] : memref<256x3xf32, #tpu.memory_space<vmem>>, vector<256x3xf32>
    %c0_1 = arith.constant 0 : index
    %c0_2 = arith.constant 0 : index
    %1 = vector.load %arg2[%c0_1, %c0_2] : memref<3x128xf32, #tpu.memory_space<vmem>>, vector<3x128xf32>
    %2 = vector.extract_strided_slice %0 {offsets = [0, 0], sizes = [256, 1], strides = [1, 1]} : vector<256x3xf32> to vector<256x1xf32>
    %3 = vector.extract_strided_slice %1 {offsets = [0, 0], sizes = [1, 128], strides = [1, 1]} : vector<3x128xf32> to vector<1x128xf32>
    %4 = vector.broadcast %2 : vector<256x1xf32> to vector<256x128xf32>
    %5 = vector.broadcast %3 : vector<1x128xf32> to vector<256x128xf32>
    %6 = arith.mulf %4, %5 : vector<256x128xf32>
    %7 = vector.extract_strided_slice %0 {offsets = [0, 1], sizes = [256, 1], strides = [1, 1]} : vector<256x3xf32> to vector<256x1xf32>
    %8 = vector.extract_strided_slice %1 {offsets = [1, 0], sizes = [1, 128], strides = [1, 1]} : vector<3x128xf32> to vector<1x128xf32>
    %9 = vector.broadcast %7 : vector<256x1xf32> to vector<256x128xf32>
    %10 = vector.broadcast %8 : vector<1x128xf32> to vector<256x128xf32>
    %11 = arith.mulf %9, %10 : vector<256x128xf32>
    %12 = arith.addf %6, %11 : vector<256x128xf32>
    %13 = vector.extract_strided_slice %0 {offsets = [0, 2], sizes = [256, 1], strides = [1, 1]} : vector<256x3xf32> to vector<256x1xf32>
    %14 = vector.extract_strided_slice %1 {offsets = [2, 0], sizes = [1, 128], strides = [1, 1]} : vector<3x128xf32> to vector<1x128xf32>
    %15 = vector.broadcast %13 : vector<256x1xf32> to vector<256x128xf32>
    %16 = vector.broadcast %14 : vector<1x128xf32> to vector<256x128xf32>
    %17 = arith.mulf %15, %16 : vector<256x128xf32>
    %18 = arith.addf %12, %17 : vector<256x128xf32>
    %c0_3 = arith.constant 0 : index
    %c0_4 = arith.constant 0 : index
    %19 = vector.load %arg3[%c0_3, %c0_4] : memref<1x128xf32, #tpu.memory_space<vmem>>, vector<1x128xf32>
    %20 = vector.broadcast %19 : vector<1x128xf32> to vector<256x128xf32>
    %21 = arith.mulf %18, %20 : vector<256x128xf32>
    %c0_5 = arith.constant 0 : index
    %c0_6 = arith.constant 0 : index
    %22 = vector.load %arg4[%c0_5, %c0_6] : memref<1x128xf32, #tpu.memory_space<vmem>>, vector<1x128xf32>
    %23 = vector.broadcast %22 : vector<1x128xf32> to vector<256x128xf32>
    %24 = arith.addf %21, %23 : vector<256x128xf32>
    %cst = arith.constant 0.000000e+00 : f32
    %25 = vector.broadcast %cst : f32 to vector<256x128xf32>
    %26 = arith.maximumf %24, %25 : vector<256x128xf32>
    %27 = arith.truncf %26 : vector<256x128xf32> to vector<256x128xbf16>
    %c0_7 = arith.constant 0 : index
    %c0_8 = arith.constant 0 : index
    %28 = vector.load %arg5[%c0_7, %c0_8] : memref<256x128xbf16, #tpu.memory_space<vmem>>, vector<256x128xbf16>
    tpu.vector_store %arg5[%c0_7, %c0_8], %27 {strides = array<i32>} : memref<256x128xbf16, #tpu.memory_space<vmem>>, vector<256x128xbf16>,
    return
  }
  func.func @transform_0(%arg0: i32) -> (i32, i32) {
    %c0_i32 = arith.constant 0 : i32
    %c0_i32_0 = arith.constant 0 : i32
    return %arg0, %c0_i32 : i32, i32
  }
  func.func @transform_1(%arg0: i32) -> (i32, i32) {
    %c0_i32 = arith.constant 0 : i32
    %c0_i32_0 = arith.constant 0 : i32
    %c0_i32_1 = arith.constant 0 : i32
    return %c0_i32, %c0_i32_0 : i32, i32
  }
  func.func @transform_2(%arg0: i32) -> (i32, i32) {
    %c0_i32 = arith.constant 0 : i32
    %c0_i32_0 = arith.constant 0 : i32
    %c0_i32_1 = arith.constant 0 : i32
    return %c0_i32, %c0_i32_0 : i32, i32
  }
  func.func @transform_3(%arg0: i32) -> (i32, i32) {
    %c0_i32 = arith.constant 0 : i32
    %c0_i32_0 = arith.constant 0 : i32
    %c0_i32_1 = arith.constant 0 : i32
    return %c0_i32, %c0_i32_0 : i32, i32
  }
  func.func @transform_4(%arg0: i32) -> (i32, i32) {
    %c0_i32 = arith.constant 0 : i32
    %c0_i32_0 = arith.constant 0 : i32
    return %arg0, %c0_i32 : i32, i32
  }
}

</mosaic_0001>

<llo_original>
// kernel: tpu_custom_call.1
$region0: #{tpu_custom_call.1}
  #allocation0 [shape = 'u32[]', space=smem, size = 0x4, offset = 0x4, fixed_abs, tag = 'smem constant byte address 0x4 - core index']
  #allocation1 [shape = 'u32[144,128]{1,0:T(1,128)}', space=vmem, size = 0x12000, scoped, tag = 'internal scratch']
  %s0 = inlined_call_operand.vmem [shape: f32[1280,3], index: 0, kind: input, shape index: {}]
  %s1 = inlined_call_operand.vmem [shape: f32[3,128], index: 1, kind: input, shape index: {}]
  %s2 = inlined_call_operand.vmem [shape: f32[1,128], index: 2, kind: input, shape index: {}]
  %s3 = inlined_call_operand.vmem [shape: f32[1,128], index: 3, kind: input, shape index: {}]
  %s4 = inlined_call_operand.hbm [shape: bf16[1280,128], index: 4, kind: output, shape index: {}]
  %s5 = sld [smem:[#allocation0]]
  $region49: #{tpu_custom_call.1} parent=0
    _
  %s7 = ssub.s32 1, %s5
  %s8 = scalar_select 0, %s7, %s5
  $region1: #{tpu_custom_call.1} parent=0
    #allocation2 [shape = 'u8[131072]{0}', space=vmem, size = 0x20000, scoped, tag = 'output window, operand 0']
    #allocation3 [shape = 's32[2]{0}', space=sflag, size = 0x8, scoped, tag = 'scoped memory for tpu_custom_call.1']
    %9 = vsyncpa [#allocation3], 0
    %s10 = scalar_lea.sflag [#allocation3], 1
    %11 = vsyncpa %s10, 0
    loop: start=0, step=1, limit=7
    $region2: #{tpu_custom_call.1} parent=1 // loop_pre_header
      _
    $region3: #{tpu_custom_call.1} parent=1 // loop_header
      %s13 = sphi 0, %s17
      %p14 = scmp.ge.s32.totalorder %s13, 7
      %s23 = sphi 0, %s25
      %s26 = sphi 0, %s23
      %s27 = sphi 0, %s26
      %s43 = sphi 0, %s27
      %s47 = sphi 0, %s47
      %s49 = sphi 0, %s47
      %s50 = sphi 0, %s49
      %s64 = sphi 0, %s50
      %s68 = sphi 0, %s68
      %s70 = sphi 0, %s68
      %s71 = sphi 0, %s70
      %s85 = sphi 0, %s71
      %s89 = sphi 0, %s89
      %s91 = sphi 0, %s89
      %s92 = sphi 0, %s91
      %s106 = sphi 0, %s92
      %s112 = sphi 0, %s114
      %s115 = sphi 0, %s112
      %s116 = sphi 0, %s115
      %s132 = sphi 0, %s116
    $region4: #{tpu_custom_call.1} parent=1 // loop_header_branch
      %16 = sbr.rel (%p14) target = $region8
    $region5: #{tpu_custom_call.1} parent=1 // loop_body
      %s18 = ssub.s32 %s13, 1
      %s19 = ssub.s32 %s13, 2
      %s20 = sadd.s32 %s13, 1
      %s21 = ssub.s32 %s13, %s20
      %p22 = scmp.eq.s32.totalorder %s21, 0
      %s24 = sadd.s32 %s23, 1
      %s25 = scalar_select %p22, %s23, %s24
      %p28 = pneg %p22
      %p29 = scmp.eq.s32.totalorder %s13, 4
      %p30 = por %p28, %p29
      %p31 = scmp.ne.s32.totalorder %s23, %s26
      %p32 = scmp.eq.s32.totalorder %s13, 0
      %p33 = por %p31, %p32
      %p34 = scmp.ne.s32.totalorder %s23, %s26
      %p35 = scmp.eq.s32.totalorder %s18, 4
      %p36 = por %p34, %p35
      %p37 = scmp.ne.s32.totalorder %s26, %s27
      %p38 = scmp.eq.s32.totalorder %s18, 0
      %p39 = por %p37, %p38
      %p40 = scmp.ne.s32.totalorder %s26, %s27
      %p41 = scmp.eq.s32.totalorder %s19, 4
      %p42 = por %p40, %p41
      %p44 = scmp.ne.s32.totalorder %s27, %s43
      %p45 = scmp.eq.s32.totalorder %s19, 0
      %p46 = por %p44, %p45
      %s48 = sadd.s32 %s47, 1
      %p51 = scmp.eq.s32.totalorder %s13, 4
      %p52 = scmp.ne.s32.totalorder %s47, %s49
      %p53 = scmp.eq.s32.totalorder %s13, 0
      %p54 = por %p52, %p53
      %p55 = scmp.ne.s32.totalorder %s47, %s49
      %p56 = scmp.eq.s32.totalorder %s18, 4
      %p57 = por %p55, %p56
      %p58 = scmp.ne.s32.totalorder %s49, %s50
      %p59 = scmp.eq.s32.totalorder %s18, 0
      %p60 = por %p58, %p59
      %p61 = scmp.ne.s32.totalorder %s49, %s50
      %p62 = scmp.eq.s32.totalorder %s19, 4
      %p63 = por %p61, %p62
      %p65 = scmp.ne.s32.totalorder %s50, %s64
      %p66 = scmp.eq.s32.totalorder %s19, 0
      %p67 = por %p65, %p66
      %s69 = sadd.s32 %s68, 1
      %p72 = scmp.eq.s32.totalorder %s13, 4
      %p73 = scmp.ne.s32.totalorder %s68, %s70
      %p74 = scmp.eq.s32.totalorder %s13, 0
      %p75 = por %p73, %p74
      %p76 = scmp.ne.s32.totalorder %s68, %s70
      %p77 = scmp.eq.s32.totalorder %s18, 4
      %p78 = por %p76, %p77
      %p79 = scmp.ne.s32.totalorder %s70, %s71
      %p80 = scmp.eq.s32.totalorder %s18, 0
      %p81 = por %p79, %p80
      %p82 = scmp.ne.s32.totalorder %s70, %s71
      %p83 = scmp.eq.s32.totalorder %s19, 4
      %p84 = por %p82, %p83
      %p86 = scmp.ne.s32.totalorder %s71, %s85
      %p87 = scmp.eq.s32.totalorder %s19, 0
      %p88 = por %p86, %p87
      %s90 = sadd.s32 %s89, 1
      %p93 = scmp.eq.s32.totalorder %s13, 4
      %p94 = scmp.ne.s32.totalorder %s89, %s91
      %p95 = scmp.eq.s32.totalorder %s13, 0
      %p96 = por %p94, %p95
      %p97 = scmp.ne.s32.totalorder %s89, %s91
      %p98 = scmp.eq.s32.totalorder %s18, 4
      %p99 = por %p97, %p98
      %p100 = scmp.ne.s32.totalorder %s91, %s92
      %p101 = scmp.eq.s32.totalorder %s18, 0
      %p102 = por %p100, %p101
      %p103 = scmp.ne.s32.totalorder %s91, %s92
      %p104 = scmp.eq.s32.totalorder %s19, 4
      %p105 = por %p103, %p104
      %p107 = scmp.ne.s32.totalorder %s92, %s106
      %p108 = scmp.eq.s32.totalorder %s19, 0
      %p109 = por %p107, %p108
      %s110 = ssub.s32 %s13, %s20
      %p111 = scmp.eq.s32.totalorder %s110, 0
      %s113 = sadd.s32 %s112, 1
      %s114 = scalar_select %p111, %s112, %s113
      %p117 = pneg %p111
      %p118 = scmp.eq.s32.totalorder %s13, 4
      %p119 = por %p117, %p118
      %p120 = scmp.ne.s32.totalorder %s112, %s115
      %p121 = scmp.eq.s32.totalorder %s13, 0
      %p122 = por %p120, %p121
      %p123 = scmp.ne.s32.totalorder %s112, %s115
      %p124 = scmp.eq.s32.totalorder %s18, 4
      %p125 = por %p123, %p124
      %p126 = scmp.ne.s32.totalorder %s115, %s116
      %p127 = scmp.eq.s32.totalorder %s18, 0
      %p128 = por %p126, %p127
      %p129 = scmp.ne.s32.totalorder %s115, %s116
      %p130 = scmp.eq.s32.totalorder %s19, 4
      %p131 = por %p129, %p130
      %p133 = scmp.ne.s32.totalorder %s116, %s132
      %p134 = scmp.eq.s32.totalorder %s19, 0
      %p135 = por %p133, %p134
      %p136 = scmp.le.s32.totalorder 1, %s13
      %p137 = scmp.lt.s32.totalorder %s13, 6
      %p138 = pnand %p136, %p137
      %p139 = pneg %p138
      // Predicated region
      $region9: #{tpu_custom_call.1} parent=5 // pred_check
        _
      $region10: #{tpu_custom_call.1} parent=5 // pred_check_branch
        %141 = sbr.rel (%p138) target = $region12
      $region11: #{tpu_custom_call.1} parent=5 // pred_region
        %s142 = ssub.s32 %s13, 1
        // Predicated region
        $region13: #{tpu_custom_call.1} parent=11 // pred_check
          %p143 = pneg %p60
        $region14: #{tpu_custom_call.1} parent=11 // pred_check_branch
          %145 = sbr.rel (%p143) target = $region16
        $region15: #{tpu_custom_call.1} parent=11 // pred_region
          _
        $region16: #{tpu_custom_call.1} parent=11 // pred_fallthru
          _
        // Predicated region
        $region17: #{tpu_custom_call.1} parent=11 // pred_check
          %p146 = pneg %p81
        $region18: #{tpu_custom_call.1} parent=11 // pred_check_branch
          %148 = sbr.rel (%p146) target = $region20
        $region19: #{tpu_custom_call.1} parent=11 // pred_region
          _
        $region20: #{tpu_custom_call.1} parent=11 // pred_fallthru
          _
        // Predicated region
        $region21: #{tpu_custom_call.1} parent=11 // pred_check
          %p149 = pneg %p102
        $region22: #{tpu_custom_call.1} parent=11 // pred_check_branch
          %151 = sbr.rel (%p149) target = $region24
        $region23: #{tpu_custom_call.1} parent=11 // pred_region
          _
        $region24: #{tpu_custom_call.1} parent=11 // pred_fallthru
          _
      $region12: #{tpu_custom_call.1} parent=5 // pred_fallthru
        _
      %p152 = scmp.lt.s32.totalorder %s13, 5
      // Predicated region
      $region25: #{tpu_custom_call.1} parent=5 // pred_check
        %p153 = pneg %p152
      $region26: #{tpu_custom_call.1} parent=5 // pred_check_branch
        %155 = sbr.rel (%p153) target = $region28
      $region27: #{tpu_custom_call.1} parent=5 // pred_region
        // Predicated region
        $region29: #{tpu_custom_call.1} parent=27 // pred_check
          %p156 = pneg %p33
        $region30: #{tpu_custom_call.1} parent=27 // pred_check_branch
          %158 = sbr.rel (%p156) target = $region32
        $region31: #{tpu_custom_call.1} parent=27 // pred_region
          %s159 = smul.u32 32, %s13
          %p160 = scmp.lt.s32.totalorder %s159, 159
          %s161 = scalar_select %p160, %s159, 159
          %s162 = smul.addr %s161, 8
          %s163 = scalar_lea.vmem %s0, %s162
          %s164 = smul.u32 32, %s13
        $region32: #{tpu_custom_call.1} parent=27 // pred_fallthru
          _
      $region28: #{tpu_custom_call.1} parent=5 // pred_fallthru
        _
      %p165 = scmp.le.s32.totalorder 1, %s13
      %p166 = scmp.lt.s32.totalorder %s13, 6
      %p167 = pnand %p165, %p166
      %p168 = pneg %p167
      // Predicated region
      $region33: #{tpu_custom_call.1} parent=5 // pred_check
        _
      $region34: #{tpu_custom_call.1} parent=5 // pred_check_branch
        %170 = sbr.rel (%p167) target = $region36
      $region35: #{tpu_custom_call.1} parent=5 // pred_region
        %s171 = ssub.s32 %s13, 1
        %s172 = smul.u32 32, %s18
        %p173 = scmp.lt.s32.totalorder %s172, 159
        %s174 = scalar_select %p173, %s172, 159
        %s175 = smul.addr %s174, 8
        %s176 = scalar_lea.vmem %s0, %s175
        %p177 = pneg %p39
        %p178 = pneg %p36
        %p179 = pneg %p60
        %p180 = pneg %p57
        %p181 = pneg %p81
        %p182 = pneg %p78
        %p183 = pneg %p102
        %p184 = pneg %p99
        %p185 = pneg %p128
        %p186 = pneg %p125
        %s187 = sand.u32 %s115, 1
        %s188 = scalar_lea.sflag [#allocation3], %s187
        %s189 = sand.u32 %s115, 1
        %s190 = smul.addr %s189, 128
        %s191 = scalar_lea.vmem [#allocation2], %s190
        %s192 = smul.u32 32, %s18
        %p193 = scmp.lt.s32.totalorder %s192, 159
        %s194 = scalar_select %p193, %s192, 159
        %s195 = smul.addr %s194, 8
        %s196 = scalar_lea.vmem %s0, %s195
        %s197 = smul.u32 32, %s18
        %s198 = smul.u32 32, %s18
        %v199 = vld [vmem:[%s196] sm:$0xff]
        %v200 = vld [vmem:[%s196 + $0x8] sm:$0xff]
        %v201 = vld [vmem:[%s196 + $0x10] sm:$0xff]
        %v202 = vld [vmem:[%s196 + $0x18] sm:$0xff]
        %v203 = vld [vmem:[%s196 + $0x20] sm:$0xff]
        %v204 = vld [vmem:[%s196 + $0x28] sm:$0xff]
        %v205 = vld [vmem:[%s196 + $0x30] sm:$0xff]
        %v206 = vld [vmem:[%s196 + $0x38] sm:$0xff]
        %v207 = vld [vmem:[%s196 + $0x40] sm:$0xff]
        %v208 = vld [vmem:[%s196 + $0x48] sm:$0xff]
        %v209 = vld [vmem:[%s196 + $0x50] sm:$0xff]
        %v210 = vld [vmem:[%s196 + $0x58] sm:$0xff]
        %v211 = vld [vmem:[%s196 + $0x60] sm:$0xff]
        %v212 = vld [vmem:[%s196 + $0x68] sm:$0xff]
        %v213 = vld [vmem:[%s196 + $0x70] sm:$0xff]
        %v214 = vld [vmem:[%s196 + $0x78] sm:$0xff]
        %v215 = vld [vmem:[%s196 + $0x80] sm:$0xff]
        %v216 = vld [vmem:[%s196 + $0x88] sm:$0xff]
        %v217 = vld [vmem:[%s196 + $0x90] sm:$0xff]
        %v218 = vld [vmem:[%s196 + $0x98] sm:$0xff]
        %v219 = vld [vmem:[%s196 + $0xa0] sm:$0xff]
        %v220 = vld [vmem:[%s196 + $0xa8] sm:$0xff]
        %v221 = vld [vmem:[%s196 + $0xb0] sm:$0xff]
        %v222 = vld [vmem:[%s196 + $0xb8] sm:$0xff]
        %v223 = vld [vmem:[%s196 + $0xc0] sm:$0xff]
        %v224 = vld [vmem:[%s196 + $0xc8] sm:$0xff]
        %v225 = vld [vmem:[%s196 + $0xd0] sm:$0xff]
        %v226 = vld [vmem:[%s196 + $0xd8] sm:$0xff]
        %v227 = vld [vmem:[%s196 + $0xe0] sm:$0xff]
        %v228 = vld [vmem:[%s196 + $0xe8] sm:$0xff]
        %v229 = vld [vmem:[%s196 + $0xf0] sm:$0xff]
        %v230 = vld [vmem:[%s196 + $0xf8] sm:$0xff]
        %v231 = vld [vmem:[%s1] sm:$0x7]
        %233 = vset.pattern.permute.xlu0 0
        %234 = vperm.xlu0 %233, %v199
        %v235 = vpop.permute.xlu0 %234
        %238 = vset.pattern.permute.xlu0 0
        %239 = vperm.xlu0 %238, %v200
        %v240 = vpop.permute.xlu0 %239
        %243 = vset.pattern.permute.xlu0 0
        %244 = vperm.xlu0 %243, %v201
        %v245 = vpop.permute.xlu0 %244
        %248 = vset.pattern.permute.xlu0 0
        %249 = vperm.xlu0 %248, %v202
        %v250 = vpop.permute.xlu0 %249
        %253 = vset.pattern.permute.xlu0 0
        %254 = vperm.xlu0 %253, %v203
        %v255 = vpop.permute.xlu0 %254
        %258 = vset.pattern.permute.xlu0 0
        %259 = vperm.xlu0 %258, %v204
        %v260 = vpop.permute.xlu0 %259
        %263 = vset.pattern.permute.xlu0 0
        %264 = vperm.xlu0 %263, %v205
        %v265 = vpop.permute.xlu0 %264
        %268 = vset.pattern.permute.xlu0 0
        %269 = vperm.xlu0 %268, %v206
        %v270 = vpop.permute.xlu0 %269
        %273 = vset.pattern.permute.xlu0 0
        %274 = vperm.xlu0 %273, %v207
        %v275 = vpop.permute.xlu0 %274
        %278 = vset.pattern.permute.xlu0 0
        %279 = vperm.xlu0 %278, %v208
        %v280 = vpop.permute.xlu0 %279
        %283 = vset.pattern.permute.xlu0 0
        %284 = vperm.xlu0 %283, %v209
        %v285 = vpop.permute.xlu0 %284
        %288 = vset.pattern.permute.xlu0 0
        %289 = vperm.xlu0 %288, %v210
        %v290 = vpop.permute.xlu0 %289
        %293 = vset.pattern.permute.xlu0 0
        %294 = vperm.xlu0 %293, %v211
        %v295 = vpop.permute.xlu0 %294
        %298 = vset.pattern.permute.xlu0 0
        %299 = vperm.xlu0 %298, %v212
        %v300 = vpop.permute.xlu0 %299
        %303 = vset.pattern.permute.xlu0 0
        %304 = vperm.xlu0 %303, %v213
        %v305 = vpop.permute.xlu0 %304
        %308 = vset.pattern.permute.xlu0 0
        %309 = vperm.xlu0 %308, %v214
        %v310 = vpop.permute.xlu0 %309
        %313 = vset.pattern.permute.xlu0 0
        %314 = vperm.xlu0 %313, %v215
        %v315 = vpop.permute.xlu0 %314
        %318 = vset.pattern.permute.xlu0 0
        %319 = vperm.xlu0 %318, %v216
        %v320 = vpop.permute.xlu0 %319
        %323 = vset.pattern.permute.xlu0 0
        %324 = vperm.xlu0 %323, %v217
        %v325 = vpop.permute.xlu0 %324
        %328 = vset.pattern.permute.xlu0 0
        %329 = vperm.xlu0 %328, %v218
        %v330 = vpop.permute.xlu0 %329
        %333 = vset.pattern.permute.xlu0 0
        %334 = vperm.xlu0 %333, %v219
        %v335 = vpop.permute.xlu0 %334
        %338 = vset.pattern.permute.xlu0 0
        %339 = vperm.xlu0 %338, %v220
        %v340 = vpop.permute.xlu0 %339
        %343 = vset.pattern.permute.xlu0 0
        %344 = vperm.xlu0 %343, %v221
        %v345 = vpop.permute.xlu0 %344
        %348 = vset.pattern.permute.xlu0 0
        %349 = vperm.xlu0 %348, %v222
        %v350 = vpop.permute.xlu0 %349
        %353 = vset.pattern.permute.xlu0 0
        %354 = vperm.xlu0 %353, %v223
        %v355 = vpop.permute.xlu0 %354
        %358 = vset.pattern.permute.xlu0 0
        %359 = vperm.xlu0 %358, %v224
        %v360 = vpop.permute.xlu0 %359
        %363 = vset.pattern.permute.xlu0 0
        %364 = vperm.xlu0 %363, %v225
        %v365 = vpop.permute.xlu0 %364
        %368 = vset.pattern.permute.xlu0 0
        %369 = vperm.xlu0 %368, %v226
        %v370 = vpop.permute.xlu0 %369
        %373 = vset.pattern.permute.xlu0 0
        %374 = vperm.xlu0 %373, %v227
        %v375 = vpop.permute.xlu0 %374
        %378 = vset.pattern.permute.xlu0 0
        %379 = vperm.xlu0 %378, %v228
        %v380 = vpop.permute.xlu0 %379
        %383 = vset.pattern.permute.xlu0 0
        %384 = vperm.xlu0 %383, %v229
        %v385 = vpop.permute.xlu0 %384
        %388 = vset.pattern.permute.xlu0 0
        %389 = vperm.xlu0 %388, %v230
        %v390 = vpop.permute.xlu0 %389
        %v392 = vlaneseq
        %v393 = vshrl.u32 %v392, 7
        %v394 = vsub.s32 0, %v393
        %v395 = vrot.slane %v231, %v394
        %v396 = vmul.f32 %v235, %v395
        %v397 = vmul.f32 %v240, %v395
        %v398 = vmul.f32 %v245, %v395
        %v399 = vmul.f32 %v250, %v395
        %v400 = vmul.f32 %v255, %v395
        %v401 = vmul.f32 %v260, %v395
        %v402 = vmul.f32 %v265, %v395
        %v403 = vmul.f32 %v270, %v395
        %v404 = vmul.f32 %v275, %v395
        %v405 = vmul.f32 %v280, %v395
        %v406 = vmul.f32 %v285, %v395
        %v407 = vmul.f32 %v290, %v395
        %v408 = vmul.f32 %v295, %v395
        %v409 = vmul.f32 %v300, %v395
        %v410 = vmul.f32 %v305, %v395
        %v411 = vmul.f32 %v310, %v395
        %v412 = vmul.f32 %v315, %v395
        %v413 = vmul.f32 %v320, %v395
        %v414 = vmul.f32 %v325, %v395
        %v415 = vmul.f32 %v330, %v395
        %v416 = vmul.f32 %v335, %v395
        %v417 = vmul.f32 %v340, %v395
        %v418 = vmul.f32 %v345, %v395
        %v419 = vmul.f32 %v350, %v395
        %v420 = vmul.f32 %v355, %v395
        %v421 = vmul.f32 %v360, %v395
        %v422 = vmul.f32 %v365, %v395
        %v423 = vmul.f32 %v370, %v395
        %v424 = vmul.f32 %v375, %v395
        %v425 = vmul.f32 %v380, %v395
        %v426 = vmul.f32 %v385, %v395
        %v427 = vmul.f32 %v390, %v395
        %428 = vset.pattern.permute.xlu0 1
        %429 = vperm.xlu0 %428, %v199
        %v430 = vpop.permute.xlu0 %429
        %432 = vset.pattern.permute.xlu0 1
        %433 = vperm.xlu0 %432, %v200
        %v434 = vpop.permute.xlu0 %433
        %436 = vset.pattern.permute.xlu0 1
        %437 = vperm.xlu0 %436, %v201
        %v438 = vpop.permute.xlu0 %437
        %440 = vset.pattern.permute.xlu0 1
        %441 = vperm.xlu0 %440, %v202
        %v442 = vpop.permute.xlu0 %441
        %444 = vset.pattern.permute.xlu0 1
        %445 = vperm.xlu0 %444, %v203
        %v446 = vpop.permute.xlu0 %445
        %448 = vset.pattern.permute.xlu0 1
        %449 = vperm.xlu0 %448, %v204
        %v450 = vpop.permute.xlu0 %449
        %452 = vset.pattern.permute.xlu0 1
        %453 = vperm.xlu0 %452, %v205
        %v454 = vpop.permute.xlu0 %453
        %456 = vset.pattern.permute.xlu0 1
        %457 = vperm.xlu0 %456, %v206
        %v458 = vpop.permute.xlu0 %457
        %460 = vset.pattern.permute.xlu0 1
        %461 = vperm.xlu0 %460, %v207
        %v462 = vpop.permute.xlu0 %461
        %464 = vset.pattern.permute.xlu0 1
        %465 = vperm.xlu0 %464, %v208
        %v466 = vpop.permute.xlu0 %465
        %468 = vset.pattern.permute.xlu0 1
        %469 = vperm.xlu0 %468, %v209
        %v470 = vpop.permute.xlu0 %469
        %472 = vset.pattern.permute.xlu0 1
        %473 = vperm.xlu0 %472, %v210
        %v474 = vpop.permute.xlu0 %473
        %476 = vset.pattern.permute.xlu0 1
        %477 = vperm.xlu0 %476, %v211
        %v478 = vpop.permute.xlu0 %477
        %480 = vset.pattern.permute.xlu0 1
        %481 = vperm.xlu0 %480, %v212
        %v482 = vpop.permute.xlu0 %481
        %484 = vset.pattern.permute.xlu0 1
        %485 = vperm.xlu0 %484, %v213
        %v486 = vpop.permute.xlu0 %485
        %488 = vset.pattern.permute.xlu0 1
        %489 = vperm.xlu0 %488, %v214
        %v490 = vpop.permute.xlu0 %489
        %492 = vset.pattern.permute.xlu0 1
        %493 = vperm.xlu0 %492, %v215
        %v494 = vpop.permute.xlu0 %493
        %496 = vset.pattern.permute.xlu0 1
        %497 = vperm.xlu0 %496, %v216
        %v498 = vpop.permute.xlu0 %497
        %500 = vset.pattern.permute.xlu0 1
        %501 = vperm.xlu0 %500, %v217
        %v502 = vpop.permute.xlu0 %501
        %504 = vset.pattern.permute.xlu0 1
        %505 = vperm.xlu0 %504, %v218
        %v506 = vpop.permute.xlu0 %505
        %508 = vset.pattern.permute.xlu0 1
        %509 = vperm.xlu0 %508, %v219
        %v510 = vpop.permute.xlu0 %509
        %512 = vset.pattern.permute.xlu0 1
        %513 = vperm.xlu0 %512, %v220
        %v514 = vpop.permute.xlu0 %513
        %516 = vset.pattern.permute.xlu0 1
        %517 = vperm.xlu0 %516, %v221
        %v518 = vpop.permute.xlu0 %517
        %520 = vset.pattern.permute.xlu0 1
        %521 = vperm.xlu0 %520, %v222
        %v522 = vpop.permute.xlu0 %521
        %524 = vset.pattern.permute.xlu0 1
        %525 = vperm.xlu0 %524, %v223
        %v526 = vpop.permute.xlu0 %525
        %528 = vset.pattern.permute.xlu0 1
        %529 = vperm.xlu0 %528, %v224
        %v530 = vpop.permute.xlu0 %529
        %532 = vset.pattern.permute.xlu0 1
        %533 = vperm.xlu0 %532, %v225
        %v534 = vpop.permute.xlu0 %533
        %536 = vset.pattern.permute.xlu0 1
        %537 = vperm.xlu0 %536, %v226
        %v538 = vpop.permute.xlu0 %537
        %540 = vset.pattern.permute.xlu0 1
        %541 = vperm.xlu0 %540, %v227
        %v542 = vpop.permute.xlu0 %541
        %544 = vset.pattern.permute.xlu0 1
        %545 = vperm.xlu0 %544, %v228
        %v546 = vpop.permute.xlu0 %545
        %548 = vset.pattern.permute.xlu0 1
        %549 = vperm.xlu0 %548, %v229
        %v550 = vpop.permute.xlu0 %549
        %552 = vset.pattern.permute.xlu0 1
        %553 = vperm.xlu0 %552, %v230
        %v554 = vpop.permute.xlu0 %553
        %v556 = vlaneseq
        %v557 = vshrl.u32 %v556, 7
        %v558 = vsub.s32 1, %v557
        %v559 = vrot.slane %v231, %v558
        %v560 = vmul.f32 %v430, %v559
        %v561 = vmul.f32 %v434, %v559
        %v562 = vmul.f32 %v438, %v559
        %v563 = vmul.f32 %v442, %v559
        %v564 = vmul.f32 %v446, %v559
        %v565 = vmul.f32 %v450, %v559
        %v566 = vmul.f32 %v454, %v559
        %v567 = vmul.f32 %v458, %v559
        %v568 = vmul.f32 %v462, %v559
        %v569 = vmul.f32 %v466, %v559
        %v570 = vmul.f32 %v470, %v559
        %v571 = vmul.f32 %v474, %v559
        %v572 = vmul.f32 %v478, %v559
        %v573 = vmul.f32 %v482, %v559
        %v574 = vmul.f32 %v486, %v559
        %v575 = vmul.f32 %v490, %v559
        %v576 = vmul.f32 %v494, %v559
        %v577 = vmul.f32 %v498, %v559
        %v578 = vmul.f32 %v502, %v559
        %v579 = vmul.f32 %v506, %v559
        %v580 = vmul.f32 %v510, %v559
        %v581 = vmul.f32 %v514, %v559
        %v582 = vmul.f32 %v518, %v559
        %v583 = vmul.f32 %v522, %v559
        %v584 = vmul.f32 %v526, %v559
        %v585 = vmul.f32 %v530, %v559
        %v586 = vmul.f32 %v534, %v559
        %v587 = vmul.f32 %v538, %v559
        %v588 = vmul.f32 %v542, %v559
        %v589 = vmul.f32 %v546, %v559
        %v590 = vmul.f32 %v550, %v559
        %v591 = vmul.f32 %v554, %v559
        %v592 = vadd.f32 %v396, %v560
        %v593 = vadd.f32 %v397, %v561
        %v594 = vadd.f32 %v398, %v562
        %v595 = vadd.f32 %v399, %v563
        %v596 = vadd.f32 %v400, %v564
        %v597 = vadd.f32 %v401, %v565
        %v598 = vadd.f32 %v402, %v566
        %v599 = vadd.f32 %v403, %v567
        %v600 = vadd.f32 %v404, %v568
        %v601 = vadd.f32 %v405, %v569
        %v602 = vadd.f32 %v406, %v570
        %v603 = vadd.f32 %v407, %v571
        %v604 = vadd.f32 %v408, %v572
        %v605 = vadd.f32 %v409, %v573
        %v606 = vadd.f32 %v410, %v574
        %v607 = vadd.f32 %v411, %v575
        %v608 = vadd.f32 %v412, %v576
        %v609 = vadd.f32 %v413, %v577
        %v610 = vadd.f32 %v414, %v578
        %v611 = vadd.f32 %v415, %v579
        %v612 = vadd.f32 %v416, %v580
        %v613 = vadd.f32 %v417, %v581
        %v614 = vadd.f32 %v418, %v582
        %v615 = vadd.f32 %v419, %v583
        %v616 = vadd.f32 %v420, %v584
        %v617 = vadd.f32 %v421, %v585
        %v618 = vadd.f32 %v422, %v586
        %v619 = vadd.f32 %v423, %v587
        %v620 = vadd.f32 %v424, %v588
        %v621 = vadd.f32 %v425, %v589
        %v622 = vadd.f32 %v426, %v590
        %v623 = vadd.f32 %v427, %v591
        %624 = vset.pattern.permute.xlu0 2
        %625 = vperm.xlu0 %624, %v199
        %v626 = vpop.permute.xlu0 %625
        %628 = vset.pattern.permute.xlu0 2
        %629 = vperm.xlu0 %628, %v200
        %v630 = vpop.permute.xlu0 %629
        %632 = vset.pattern.permute.xlu0 2
        %633 = vperm.xlu0 %632, %v201
        %v634 = vpop.permute.xlu0 %633
        %636 = vset.pattern.permute.xlu0 2
        %637 = vperm.xlu0 %636, %v202
        %v638 = vpop.permute.xlu0 %637
        %640 = vset.pattern.permute.xlu0 2
        %641 = vperm.xlu0 %640, %v203
        %v642 = vpop.permute.xlu0 %641
        %644 = vset.pattern.permute.xlu0 2
        %645 = vperm.xlu0 %644, %v204
        %v646 = vpop.permute.xlu0 %645
        %648 = vset.pattern.permute.xlu0 2
        %649 = vperm.xlu0 %648, %v205
        %v650 = vpop.permute.xlu0 %649
        %652 = vset.pattern.permute.xlu0 2
        %653 = vperm.xlu0 %652, %v206
        %v654 = vpop.permute.xlu0 %653
        %656 = vset.pattern.permute.xlu0 2
        %657 = vperm.xlu0 %656, %v207
        %v658 = vpop.permute.xlu0 %657
        %660 = vset.pattern.permute.xlu0 2
        %661 = vperm.xlu0 %660, %v208
        %v662 = vpop.permute.xlu0 %661
        %664 = vset.pattern.permute.xlu0 2
        %665 = vperm.xlu0 %664, %v209
        %v666 = vpop.permute.xlu0 %665
        %668 = vset.pattern.permute.xlu0 2
        %669 = vperm.xlu0 %668, %v210
        %v670 = vpop.permute.xlu0 %669
        %672 = vset.pattern.permute.xlu0 2
        %673 = vperm.xlu0 %672, %v211
        %v674 = vpop.permute.xlu0 %673
        %676 = vset.pattern.permute.xlu0 2
        %677 = vperm.xlu0 %676, %v212
        %v678 = vpop.permute.xlu0 %677
        %680 = vset.pattern.permute.xlu0 2
        %681 = vperm.xlu0 %680, %v213
        %v682 = vpop.permute.xlu0 %681
        %684 = vset.pattern.permute.xlu0 2
        %685 = vperm.xlu0 %684, %v214
        %v686 = vpop.permute.xlu0 %685
        %688 = vset.pattern.permute.xlu0 2
        %689 = vperm.xlu0 %688, %v215
        %v690 = vpop.permute.xlu0 %689
        %692 = vset.pattern.permute.xlu0 2
        %693 = vperm.xlu0 %692, %v216
        %v694 = vpop.permute.xlu0 %693
        %696 = vset.pattern.permute.xlu0 2
        %697 = vperm.xlu0 %696, %v217
        %v698 = vpop.permute.xlu0 %697
        %700 = vset.pattern.permute.xlu0 2
        %701 = vperm.xlu0 %700, %v218
        %v702 = vpop.permute.xlu0 %701
        %704 = vset.pattern.permute.xlu0 2
        %705 = vperm.xlu0 %704, %v219
        %v706 = vpop.permute.xlu0 %705
        %708 = vset.pattern.permute.xlu0 2
        %709 = vperm.xlu0 %708, %v220
        %v710 = vpop.permute.xlu0 %709
        %712 = vset.pattern.permute.xlu0 2
        %713 = vperm.xlu0 %712, %v221
        %v714 = vpop.permute.xlu0 %713
        %716 = vset.pattern.permute.xlu0 2
        %717 = vperm.xlu0 %716, %v222
        %v718 = vpop.permute.xlu0 %717
        %720 = vset.pattern.permute.xlu0 2
        %721 = vperm.xlu0 %720, %v223
        %v722 = vpop.permute.xlu0 %721
        %724 = vset.pattern.permute.xlu0 2
        %725 = vperm.xlu0 %724, %v224
        %v726 = vpop.permute.xlu0 %725
        %728 = vset.pattern.permute.xlu0 2
        %729 = vperm.xlu0 %728, %v225
        %v730 = vpop.permute.xlu0 %729
        %732 = vset.pattern.permute.xlu0 2
        %733 = vperm.xlu0 %732, %v226
        %v734 = vpop.permute.xlu0 %733
        %736 = vset.pattern.permute.xlu0 2
        %737 = vperm.xlu0 %736, %v227
        %v738 = vpop.permute.xlu0 %737
        %740 = vset.pattern.permute.xlu0 2
        %741 = vperm.xlu0 %740, %v228
        %v742 = vpop.permute.xlu0 %741
        %744 = vset.pattern.permute.xlu0 2
        %745 = vperm.xlu0 %744, %v229
        %v746 = vpop.permute.xlu0 %745
        %748 = vset.pattern.permute.xlu0 2
        %749 = vperm.xlu0 %748, %v230
        %v750 = vpop.permute.xlu0 %749
        %v752 = vlaneseq
        %v753 = vshrl.u32 %v752, 7
        %v754 = vsub.s32 2, %v753
        %v755 = vrot.slane %v231, %v754
        %v756 = vmul.f32 %v626, %v755
        %v757 = vmul.f32 %v630, %v755
        %v758 = vmul.f32 %v634, %v755
        %v759 = vmul.f32 %v638, %v755
        %v760 = vmul.f32 %v642, %v755
        %v761 = vmul.f32 %v646, %v755
        %v762 = vmul.f32 %v650, %v755
        %v763 = vmul.f32 %v654, %v755
        %v764 = vmul.f32 %v658, %v755
        %v765 = vmul.f32 %v662, %v755
        %v766 = vmul.f32 %v666, %v755
        %v767 = vmul.f32 %v670, %v755
        %v768 = vmul.f32 %v674, %v755
        %v769 = vmul.f32 %v678, %v755
        %v770 = vmul.f32 %v682, %v755
        %v771 = vmul.f32 %v686, %v755
        %v772 = vmul.f32 %v690, %v755
        %v773 = vmul.f32 %v694, %v755
        %v774 = vmul.f32 %v698, %v755
        %v775 = vmul.f32 %v702, %v755
        %v776 = vmul.f32 %v706, %v755
        %v777 = vmul.f32 %v710, %v755
        %v778 = vmul.f32 %v714, %v755
        %v779 = vmul.f32 %v718, %v755
        %v780 = vmul.f32 %v722, %v755
        %v781 = vmul.f32 %v726, %v755
        %v782 = vmul.f32 %v730, %v755
        %v783 = vmul.f32 %v734, %v755
        %v784 = vmul.f32 %v738, %v755
        %v785 = vmul.f32 %v742, %v755
        %v786 = vmul.f32 %v746, %v755
        %v787 = vmul.f32 %v750, %v755
        %v788 = vadd.f32 %v592, %v756
        %v789 = vadd.f32 %v593, %v757
        %v790 = vadd.f32 %v594, %v758
        %v791 = vadd.f32 %v595, %v759
        %v792 = vadd.f32 %v596, %v760
        %v793 = vadd.f32 %v597, %v761
        %v794 = vadd.f32 %v598, %v762
        %v795 = vadd.f32 %v599, %v763
        %v796 = vadd.f32 %v600, %v764
        %v797 = vadd.f32 %v601, %v765
        %v798 = vadd.f32 %v602, %v766
        %v799 = vadd.f32 %v603, %v767
        %v800 = vadd.f32 %v604, %v768
        %v801 = vadd.f32 %v605, %v769
        %v802 = vadd.f32 %v606, %v770
        %v803 = vadd.f32 %v607, %v771
        %v804 = vadd.f32 %v608, %v772
        %v805 = vadd.f32 %v609, %v773
        %v806 = vadd.f32 %v610, %v774
        %v807 = vadd.f32 %v611, %v775
        %v808 = vadd.f32 %v612, %v776
        %v809 = vadd.f32 %v613, %v777
        %v810 = vadd.f32 %v614, %v778
        %v811 = vadd.f32 %v615, %v779
        %v812 = vadd.f32 %v616, %v780
        %v813 = vadd.f32 %v617, %v781
        %v814 = vadd.f32 %v618, %v782
        %v815 = vadd.f32 %v619, %v783
        %v816 = vadd.f32 %v620, %v784
        %v817 = vadd.f32 %v621, %v785
        %v818 = vadd.f32 %v622, %v786
        %v819 = vadd.f32 %v623, %v787
        %v820 = vld [vmem:[%s2] sm:$0x1]
        %v822 = vlaneseq
        %v823 = vshrl.u32 %v822, 7
        %v824 = vsub.s32 0, %v823
        %v825 = vrot.slane %v820, %v824
        %v827 = vmul.f32 %v788, %v825
        %v828 = vmul.f32 %v789, %v825
        %v829 = vmul.f32 %v790, %v825
        %v830 = vmul.f32 %v791, %v825
        %v831 = vmul.f32 %v792, %v825
        %v832 = vmul.f32 %v793, %v825
        %v833 = vmul.f32 %v794, %v825
        %v834 = vmul.f32 %v795, %v825
        %v835 = vmul.f32 %v796, %v825
        %v836 = vmul.f32 %v797, %v825
        %v837 = vmul.f32 %v798, %v825
        %v838 = vmul.f32 %v799, %v825
        %v839 = vmul.f32 %v800, %v825
        %v840 = vmul.f32 %v801, %v825
        %v841 = vmul.f32 %v802, %v825
        %v842 = vmul.f32 %v803, %v825
        %v843 = vmul.f32 %v804, %v825
        %v844 = vmul.f32 %v805, %v825
        %v845 = vmul.f32 %v806, %v825
        %v846 = vmul.f32 %v807, %v825
        %v847 = vmul.f32 %v808, %v825
        %v848 = vmul.f32 %v809, %v825
        %v849 = vmul.f32 %v810, %v825
        %v850 = vmul.f32 %v811, %v825
        %v851 = vmul.f32 %v812, %v825
        %v852 = vmul.f32 %v813, %v825
        %v853 = vmul.f32 %v814, %v825
        %v854 = vmul.f32 %v815, %v825
        %v855 = vmul.f32 %v816, %v825
        %v856 = vmul.f32 %v817, %v825
        %v857 = vmul.f32 %v818, %v825
        %v858 = vmul.f32 %v819, %v825
        %v859 = vld [vmem:[%s3] sm:$0x1]
        %v861 = vlaneseq
        %v862 = vshrl.u32 %v861, 7
        %v863 = vsub.s32 0, %v862
        %v864 = vrot.slane %v859, %v863
        %v866 = vadd.f32 %v827, %v864
        %v867 = vadd.f32 %v828, %v864
        %v868 = vadd.f32 %v829, %v864
        %v869 = vadd.f32 %v830, %v864
        %v870 = vadd.f32 %v831, %v864
        %v871 = vadd.f32 %v832, %v864
        %v872 = vadd.f32 %v833, %v864
        %v873 = vadd.f32 %v834, %v864
        %v874 = vadd.f32 %v835, %v864
        %v875 = vadd.f32 %v836, %v864
        %v876 = vadd.f32 %v837, %v864
        %v877 = vadd.f32 %v838, %v864
        %v878 = vadd.f32 %v839, %v864
        %v879 = vadd.f32 %v840, %v864
        %v880 = vadd.f32 %v841, %v864
        %v881 = vadd.f32 %v842, %v864
        %v882 = vadd.f32 %v843, %v864
        %v883 = vadd.f32 %v844, %v864
        %v884 = vadd.f32 %v845, %v864
        %v885 = vadd.f32 %v846, %v864
        %v886 = vadd.f32 %v847, %v864
        %v887 = vadd.f32 %v848, %v864
        %v888 = vadd.f32 %v849, %v864
        %v889 = vadd.f32 %v850, %v864
        %v890 = vadd.f32 %v851, %v864
        %v891 = vadd.f32 %v852, %v864
        %v892 = vadd.f32 %v853, %v864
        %v893 = vadd.f32 %v854, %v864
        %v894 = vadd.f32 %v855, %v864
        %v895 = vadd.f32 %v856, %v864
        %v896 = vadd.f32 %v857, %v864
        %v897 = vadd.f32 %v858, %v864
        %v898 = vmax.f32 %v866, 0.0
        %v899 = vmax.f32 %v867, 0.0
        %v900 = vmax.f32 %v868, 0.0
        %v901 = vmax.f32 %v869, 0.0
        %v902 = vmax.f32 %v870, 0.0
        %v903 = vmax.f32 %v871, 0.0
        %v904 = vmax.f32 %v872, 0.0
        %v905 = vmax.f32 %v873, 0.0
        %v906 = vmax.f32 %v874, 0.0
        %v907 = vmax.f32 %v875, 0.0
        %v908 = vmax.f32 %v876, 0.0
        %v909 = vmax.f32 %v877, 0.0
        %v910 = vmax.f32 %v878, 0.0
        %v911 = vmax.f32 %v879, 0.0
        %v912 = vmax.f32 %v880, 0.0
        %v913 = vmax.f32 %v881, 0.0
        %v914 = vmax.f32 %v882, 0.0
        %v915 = vmax.f32 %v883, 0.0
        %v916 = vmax.f32 %v884, 0.0
        %v917 = vmax.f32 %v885, 0.0
        %v918 = vmax.f32 %v886, 0.0
        %v919 = vmax.f32 %v887, 0.0
        %v920 = vmax.f32 %v888, 0.0
        %v921 = vmax.f32 %v889, 0.0
        %v922 = vmax.f32 %v890, 0.0
        %v923 = vmax.f32 %v891, 0.0
        %v924 = vmax.f32 %v892, 0.0
        %v925 = vmax.f32 %v893, 0.0
        %v926 = vmax.f32 %v894, 0.0
        %v927 = vmax.f32 %v895, 0.0
        %v928 = vmax.f32 %v896, 0.0
        %v929 = vmax.f32 %v897, 0.0
        %v930 = vpack.c.bf16 %v899, %v898
        %v931 = vpack.c.bf16 %v901, %v900
        %v932 = vpack.c.bf16 %v903, %v902
        %v933 = vpack.c.bf16 %v905, %v904
        %v934 = vpack.c.bf16 %v907, %v906
        %v935 = vpack.c.bf16 %v909, %v908
        %v936 = vpack.c.bf16 %v911, %v910
        %v937 = vpack.c.bf16 %v913, %v912
        %v938 = vpack.c.bf16 %v915, %v914
        %v939 = vpack.c.bf16 %v917, %v916
        %v940 = vpack.c.bf16 %v919, %v918
        %v941 = vpack.c.bf16 %v921, %v920
        %v942 = vpack.c.bf16 %v923, %v922
        %v943 = vpack.c.bf16 %v925, %v924
        %v944 = vpack.c.bf16 %v927, %v926
        %v945 = vpack.c.bf16 %v929, %v928
        %v962 = vunpack.c.l.b16 %v930
        %v963 = vunpack.c.h.b16 %v930
        %v964 = vunpack.c.l.b16 %v931
        %v965 = vunpack.c.h.b16 %v931
        %v966 = vunpack.c.l.b16 %v932
        %v967 = vunpack.c.h.b16 %v932
        %v968 = vunpack.c.l.b16 %v933
        %v969 = vunpack.c.h.b16 %v933
        %v970 = vunpack.c.l.b16 %v934
        %v971 = vunpack.c.h.b16 %v934
        %v972 = vunpack.c.l.b16 %v935
        %v973 = vunpack.c.h.b16 %v935
        %v974 = vunpack.c.l.b16 %v936
        %v975 = vunpack.c.h.b16 %v936
        %v976 = vunpack.c.l.b16 %v937
        %v977 = vunpack.c.h.b16 %v937
        %v978 = vunpack.c.l.b16 %v938
        %v979 = vunpack.c.h.b16 %v938
        %v980 = vunpack.c.l.b16 %v939
        %v981 = vunpack.c.h.b16 %v939
        %v982 = vunpack.c.l.b16 %v940
        %v983 = vunpack.c.h.b16 %v940
        %v984 = vunpack.c.l.b16 %v941
        %v985 = vunpack.c.h.b16 %v941
        %v986 = vunpack.c.l.b16 %v942
        %v987 = vunpack.c.h.b16 %v942
        %v988 = vunpack.c.l.b16 %v943
        %v989 = vunpack.c.h.b16 %v943
        %v990 = vunpack.c.l.b16 %v944
        %v991 = vunpack.c.h.b16 %v944
        %v992 = vunpack.c.l.b16 %v945
        %v993 = vunpack.c.h.b16 %v945
        %v994 = vpack.c.b16 %v962, %v962
        %v995 = vpack.c.b16 %v963, %v963
        %v996 = vpack.c.b16 %v964, %v964
        %v997 = vpack.c.b16 %v965, %v965
        %v998 = vpack.c.b16 %v966, %v966
        %v999 = vpack.c.b16 %v967, %v967
        %v1000 = vpack.c.b16 %v968, %v968
        %v1001 = vpack.c.b16 %v969, %v969
        %v1002 = vpack.c.b16 %v970, %v970
        %v1003 = vpack.c.b16 %v971, %v971
        %v1004 = vpack.c.b16 %v972, %v972
        %v1005 = vpack.c.b16 %v973, %v973
        %v1006 = vpack.c.b16 %v974, %v974
        %v1007 = vpack.c.b16 %v975, %v975
        %v1008 = vpack.c.b16 %v976, %v976
        %v1009 = vpack.c.b16 %v977, %v977
        %v1010 = vpack.c.b16 %v978, %v978
        %v1011 = vpack.c.b16 %v979, %v979
        %v1012 = vpack.c.b16 %v980, %v980
        %v1013 = vpack.c.b16 %v981, %v981
        %v1014 = vpack.c.b16 %v982, %v982
        %v1015 = vpack.c.b16 %v983, %v983
        %v1016 = vpack.c.b16 %v984, %v984
        %v1017 = vpack.c.b16 %v985, %v985
        %v1018 = vpack.c.b16 %v986, %v986
        %v1019 = vpack.c.b16 %v987, %v987
        %v1020 = vpack.c.b16 %v988, %v988
        %v1021 = vpack.c.b16 %v989, %v989
        %v1022 = vpack.c.b16 %v990, %v990
        %v1023 = vpack.c.b16 %v991, %v991
        %v1024 = vpack.c.b16 %v992, %v992
        %v1025 = vpack.c.b16 %v993, %v993
        %1058 = vst [vmem:[%s191] sm:$0xf] %v994
        %1059 = vst [vmem:[%s191 + $0x4] sm:$0xf] %v995
        %1060 = vst [vmem:[%s191 + $0x8] sm:$0xf] %v996
        %1061 = vst [vmem:[%s191 + $0xc] sm:$0xf] %v997
        %1062 = vst [vmem:[%s191 + $0x10] sm:$0xf] %v998
        %1063 = vst [vmem:[%s191 + $0x14] sm:$0xf] %v999
        %1064 = vst [vmem:[%s191 + $0x18] sm:$0xf] %v1000
        %1065 = vst [vmem:[%s191 + $0x1c] sm:$0xf] %v1001
        %1066 = vst [vmem:[%s191 + $0x20] sm:$0xf] %v1002
        %1067 = vst [vmem:[%s191 + $0x24] sm:$0xf] %v1003
        %1068 = vst [vmem:[%s191 + $0x28] sm:$0xf] %v1004
        %1069 = vst [vmem:[%s191 + $0x2c] sm:$0xf] %v1005
        %1070 = vst [vmem:[%s191 + $0x30] sm:$0xf] %v1006
        %1071 = vst [vmem:[%s191 + $0x34] sm:$0xf] %v1007
        %1072 = vst [vmem:[%s191 + $0x38] sm:$0xf] %v1008
        %1073 = vst [vmem:[%s191 + $0x3c] sm:$0xf] %v1009
        %1074 = vst [vmem:[%s191 + $0x40] sm:$0xf] %v1010
        %1075 = vst [vmem:[%s191 + $0x44] sm:$0xf] %v1011
        %1076 = vst [vmem:[%s191 + $0x48] sm:$0xf] %v1012
        %1077 = vst [vmem:[%s191 + $0x4c] sm:$0xf] %v1013
        %1078 = vst [vmem:[%s191 + $0x50] sm:$0xf] %v1014
        %1079 = vst [vmem:[%s191 + $0x54] sm:$0xf] %v1015
        %1080 = vst [vmem:[%s191 + $0x58] sm:$0xf] %v1016
        %1081 = vst [vmem:[%s191 + $0x5c] sm:$0xf] %v1017
        %1082 = vst [vmem:[%s191 + $0x60] sm:$0xf] %v1018
        %1083 = vst [vmem:[%s191 + $0x64] sm:$0xf] %v1019
        %1084 = vst [vmem:[%s191 + $0x68] sm:$0xf] %v1020
        %1085 = vst [vmem:[%s191 + $0x6c] sm:$0xf] %v1021
        %1086 = vst [vmem:[%s191 + $0x70] sm:$0xf] %v1022
        %1087 = vst [vmem:[%s191 + $0x74] sm:$0xf] %v1023
        %1088 = vst [vmem:[%s191 + $0x78] sm:$0xf] %v1024
        %1089 = vst [vmem:[%s191 + $0x7c] sm:$0xf] %v1025
        %s1090 = sand.u32 %s115, 1
        %s1091 = scalar_lea.sflag [#allocation3], %s1090
        %s1092 = sand.u32 %s115, 1
        %s1093 = smul.addr %s1092, 128
        %s1094 = scalar_lea.vmem [#allocation2], %s1093
        // Predicated region
        $region37: #{tpu_custom_call.1} parent=35 // pred_check
          %p1095 = pneg %p125
        $region38: #{tpu_custom_call.1} parent=35 // pred_check_branch
          %1097 = sbr.rel (%p1095) target = $region40
        $region39: #{tpu_custom_call.1} parent=35 // pred_region
          %s1098 = smul.u32 32, %s18
          %s1100 = ssub.s32 2048, 2048
          %1101 = vsyncadd %s1091, %s1100
          %s1102 = smul.addr %s1098, 64
          %s1103 = scalar_lea.hbm %s4, %s1102
          %s1104 = sshll.u32 %s1094, 4
          %s1105 = int_to_ptr.vmem [resolvable:$true] %s1104
          %1110 = dma.vmem_to_hbm [thread:$0]  %s1105, 2048, %s1103, %s1091, 64, 64, 4
        $region40: #{tpu_custom_call.1} parent=35 // pred_fallthru
          _
      $region36: #{tpu_custom_call.1} parent=5 // pred_fallthru
        _
      %p1111 = scmp.le.s32.totalorder 2, %s13
      // Predicated region
      $region41: #{tpu_custom_call.1} parent=5 // pred_check
        %p1112 = pneg %p1111
      $region42: #{tpu_custom_call.1} parent=5 // pred_check_branch
        %1114 = sbr.rel (%p1112) target = $region44
      $region43: #{tpu_custom_call.1} parent=5 // pred_region
        %s1115 = ssub.s32 %s13, 2
        // Predicated region
        $region45: #{tpu_custom_call.1} parent=43 // pred_check
          %p1116 = pneg %p131
        $region46: #{tpu_custom_call.1} parent=43 // pred_check_branch
          %1118 = sbr.rel (%p1116) target = $region48
        $region47: #{tpu_custom_call.1} parent=43 // pred_region
          %s1119 = sand.u32 %s116, 1
          %s1120 = scalar_lea.sflag [#allocation3], %s1119
          %s1121 = sand.u32 %s116, 1
          %s1122 = smul.addr %s1121, 128
          %s1123 = scalar_lea.vmem [#allocation2], %s1122
          %1124 = dma.done %s1120, 2048
        $region48: #{tpu_custom_call.1} parent=43 // pred_fallthru
          _
      $region44: #{tpu_custom_call.1} parent=5 // pred_fallthru
        _
    $region6: #{tpu_custom_call.1} parent=1 // loop_footer
      %s17 = sadd.s32 1, %s13
    $region7: #{tpu_custom_call.1} parent=1 // loop_footer_branch
      %12 = sbr.rel target = $region3
    $region8: #{tpu_custom_call.1} parent=1 // loop_exit
      _
    %1125 = vsyncpa [#allocation3], 1
    %s1126 = scalar_lea.sflag [#allocation3], 1
    %1127 = vsyncpa %s1126, 1

</llo_original>
